<compile_context>
chip_gen: v5e
topology: v5e:2x2
jax: 0.10.0
libtpu: 0.0.40
codegen_flags: <defaults>
</compile_context>

<pallas_src>
import functools

import jax
import jax.numpy as jnp
from jax.experimental import pallas as pl
from jax.experimental.pallas import tpu as pltpu


def _postprocess_kernel(logits_ref,   # VMEM (BT, Q, C)   native dtype
                        bbt_ref,      # VMEM (BT, 4, Q)   native dtype, rows=(cx,cy,w,h)
                        scale_ref,    # VMEM (BT, 4, 1)   f32, rows=[w,h,w,h]
                        scores_ref,   # VMEM (BT, 1, Q)   f32 out
                        labels_ref,   # VMEM (BT, 1, Q)   i32 out
                        boxes_ref):   # VMEM (BT, 4, Q)   f32 out, rows=(x0,y0,x1,y1)
    # ---- scores / labels without materializing softmax ----------------------
    # Upcast after load (bf16 in HBM -> f32 in vregs; v5e VPU/EUP have no bf16).
    x = logits_ref[...].astype(jnp.float32)               # (BT, Q, C)
    bt, q, c = x.shape

    m = jnp.max(x, axis=-1, keepdims=True)                # (BT, Q, 1)
    denom = jnp.sum(jnp.exp(x - m), axis=-1)              # (BT, Q), exp on EUP
    # max softmax prob == 1 / sum(exp(x - max)); vrcp (EUP) is otherwise idle.
    scores_ref[...] = pl.reciprocal(denom, approx=True)[:, None, :]

    col = jax.lax.broadcasted_iota(jnp.int32, (bt, q, c), 2)
    labels = jnp.min(jnp.where(x == m, col, c), axis=-1)  # first-max index == argmax
    labels_ref[...] = labels[:, None, :]

    # ---- boxes: cxcywh -> xyxy, clamp [0,1], scale by [w,h,w,h] --------------
    # Slab-layout math: no per-row extraction, no lane-axis concatenation.
    bb = bbt_ref[...].astype(jnp.float32)                  # (BT, 4, Q)
    ctr = bb[:, 0:2, :]                                    # (BT, 2, Q) = (cx, cy)
    half = 0.5 * bb[:, 2:4, :]                             # (BT, 2, Q) = (w/2, h/2)
    scale = scale_ref[...]                                 # (BT, 4, 1) = [w, h, w, h]
    boxes_ref[:, 0:2, :] = jnp.clip(ctr - half, 0.0, 1.0) * scale[:, 0:2, :]
    boxes_ref[:, 2:4, :] = jnp.clip(ctr + half, 0.0, 1.0) * scale[:, 2:4, :]


def _round_up(n, m):
    return ((n + m - 1) // m) * m


def _batch_tiling(B, Q, C, in_itemsize):
    """Pick (num_tiles, bt, vmem_limit_bytes) with (8,128)-padding-aware accounting."""
    q8 = _round_up(Q, 8)
    c128 = _round_up(C, 128)
    q128 = _round_up(Q, 128)
    # Padded per-image VMEM bytes for every buffer the kernel touches.
    logits_b = q8 * c128 * in_itemsize                # (Q, C) tile-padded, native dtype
    boxin_b = 8 * q128 * in_itemsize                  # (4, Q) -> (8, Qp)
    scale_b = 8 * 128 * 4                             # (4, 1) -> one full (8,128) f32 tile
    scores_b = 8 * q128 * 4                           # (1, Q) -> (8, Qp)
    labels_b = 8 * q128 * 4
    boxout_b = 8 * q128 * 4                           # (4, Q) -> (8, Qp)
    per_img = logits_b + boxin_b + scale_b + scores_b + labels_b + boxout_b

    # Size the slab against the actual chip's VMEM (v7x: 64 MiB, v5e/v6e: 128 MiB).
    try:
        vmem_cap = int(pltpu.get_tpu_info().vmem_capacity_bytes)
    except Exception:
        vmem_cap = 64 * 1024 * 1024
    budget = min(vmem_cap // 4, 24 * 1024 * 1024)     # double-buffered slab budget

    bt = max(1, min(B, budget // (2 * per_img)))
    if B >= 2:
        bt = min(bt, (B + 1) // 2)                    # >= 2 grid steps: use both v7x TCs
    num_tiles = pl.cdiv(B, bt)                        # pad B up rather than shrink bt

    vmem_limit = 2 * bt * per_img + (4 << 20)         # double buffers + headroom
    vmem_limit = int(min(max(vmem_limit, 16 << 20), int(vmem_cap * 0.75)))
    return num_tiles, bt, vmem_limit


@functools.partial(jax.jit, static_argnames=())
def postprocess(pred_logits, pred_boxes, cls_logits, target_sizes):
    B, Q, C = pred_logits.shape
    in_itemsize = jnp.dtype(pred_logits.dtype).itemsize
    num_tiles, bt, vmem_limit = _batch_tiling(B, Q, C, in_itemsize)
    B_pad = num_tiles * bt

    # Native-dtype inputs (no wrapper upcast of the dominant logits stream).
    logits = pred_logits
    boxes_t = jnp.transpose(pred_boxes, (0, 2, 1))                        # (B, 4, Q)
    ts = target_sizes.astype(jnp.float32)                                 # (B, 2) = (h, w)
    scale = jnp.stack([ts[:, 1], ts[:, 0], ts[:, 1], ts[:, 0]], axis=1)   # (B, 4) = [w,h,w,h]
    scale = scale[:, :, None]                                             # (B, 4, 1)

    if B_pad != B:
        pad = B_pad - B
        logits = jnp.pad(logits, ((0, pad), (0, 0), (0, 0)))
        boxes_t = jnp.pad(boxes_t, ((0, pad), (0, 0), (0, 0)))
        scale = jnp.pad(scale, ((0, pad), (0, 0), (0, 0)))

    out_shapes = (
        jax.ShapeDtypeStruct((B_pad, 1, Q), jnp.float32),   # scores (Q lane-dense)
        jax.ShapeDtypeStruct((B_pad, 1, Q), jnp.int32),     # labels (Q lane-dense)
        jax.ShapeDtypeStruct((B_pad, 4, Q), jnp.float32),   # boxes  (xyxy rows)
    )

    scores3, labels3, boxes3 = pl.pallas_call(
        _postprocess_kernel,
        out_shape=out_shapes,
        grid=(num_tiles,),
        in_specs=[
            pl.BlockSpec((bt, Q, C), lambda t: (t, 0, 0)),
            pl.BlockSpec((bt, 4, Q), lambda t: (t, 0, 0)),
            pl.BlockSpec((bt, 4, 1), lambda t: (t, 0, 0)),
        ],
        out_specs=[
            pl.BlockSpec((bt, 1, Q), lambda t: (t, 0, 0)),
            pl.BlockSpec((bt, 1, Q), lambda t: (t, 0, 0)),
            pl.BlockSpec((bt, 4, Q), lambda t: (t, 0, 0)),
        ],
        compiler_params=pltpu.CompilerParams(
            dimension_semantics=("parallel",),
            vmem_limit_bytes=vmem_limit),
    )(logits, boxes_t, scale)

    scores = scores3[:B, 0, :]                             # (B, Q)
    labels = labels3[:B, 0, :]                             # (B, Q) int32
    boxes = jnp.transpose(boxes3[:B], (0, 2, 1))           # (B, Q, 4) xyxy

    # Per-image classification argmax: tiny (B x NC), done outside the kernel.
    cls_preds = jnp.argmax(cls_logits, axis=1).astype(jnp.int32)
    return scores, labels, boxes, cls_preds


def postprocess_results(pred_logits, pred_boxes, cls_logits, target_sizes):
    """Mimics PostProcess.forward (nms=False): list of per-image dicts."""
    scores, labels, boxes, cls_preds = postprocess(
        pred_logits, pred_boxes, cls_logits, target_sizes)
    return [{'scores': s, 'labels': l, 'boxes': b, 'cls': c}
            for s, l, b, c in zip(scores, labels, boxes, cls_preds)]


def _reference(pred_logits, pred_boxes, cls_logits, target_sizes):
    prob = jax.nn.softmax(pred_logits.astype(jnp.float32), axis=-1)
    scores = prob.max(-1)
    labels = prob.argmax(-1).astype(jnp.int32)
    bb = pred_boxes.astype(jnp.float32)
    cx, cy, w, h = jnp.split(bb, 4, axis=-1)
    boxes = jnp.concatenate([cx - 0.5 * w, cy - 0.5 * h,
                             cx + 0.5 * w, cy + 0.5 * h], axis=-1)
    boxes = jnp.clip(boxes, 0.0, 1.0)
    img_h = target_sizes[:, 0].astype(jnp.float32)
    img_w = target_sizes[:, 1].astype(jnp.float32)
    scale = jnp.stack([img_w, img_h, img_w, img_h], axis=1)[:, None, :]
    boxes = boxes * scale
    cls_preds = jnp.argmax(cls_logits, axis=1).astype(jnp.int32)
    return scores, labels, boxes, cls_preds


if __name__ == "__main__":
    B, Q, C, NC = 2, 8, 32, 5
    key = jax.random.PRNGKey(0)
    k1, k2, k3 = jax.random.split(key, 3)

    pred_logits = jax.random.normal(k1, (B, Q, C), dtype=jnp.float32)
    pred_boxes = jax.random.uniform(k2, (B, Q, 4), dtype=jnp.float32)   # cxcywh in [0,1]
    cls_logits = jax.random.normal(k3, (B, NC), dtype=jnp.float32)
    target_sizes = jnp.array([[480, 640], [320, 512]], dtype=jnp.int32)  # (h, w)

    scores, labels, boxes, cls_preds = postprocess(
        pred_logits, pred_boxes, cls_logits, target_sizes)
    jax.block_until_ready((scores, labels, boxes, cls_preds))

    r_scores, r_labels, r_boxes, r_cls = _reference(
        pred_logits, pred_boxes, cls_logits, target_sizes)

    # approx=True reciprocal -> relaxed score tolerance (~1e-3 rel).
    assert jnp.allclose(scores, r_scores, rtol=2e-3, atol=2e-3), "scores mismatch"
    assert jnp.array_equal(labels, r_labels), "labels mismatch"
    assert jnp.allclose(boxes, r_boxes, atol=1e-3), "boxes mismatch"
    assert jnp.array_equal(cls_preds, r_cls), "cls mismatch"

    _ = postprocess_results(pred_logits, pred_boxes, cls_logits, target_sizes)
    print("KERNEL_OK")
</pallas_src>

<mosaic_0001>
module attributes {stable_mosaic.version = 11 : i64} {
  func.func @_postprocess_kernel(%arg0: i32, %arg1: memref<1x8x32xf32, #tpu.memory_space<vmem>>, %arg2: memref<1x4x8xf32, #tpu.memory_space<vmem>>, %arg3: memref<1x4x1xf32, #tpu.memory_space<vmem>>, %arg4: memref<1x1x8xf32, #tpu.memory_space<vmem>>, %arg5: memref<1x1x8xi32, #tpu.memory_space<vmem>>, %arg6: memref<1x4x8xf32, #tpu.memory_space<vmem>>) attributes {dimension_semantics = [#tpu.dimension_semantics<parallel>], iteration_bounds = array<i64: 2>, scalar_prefetch = 0 : i64, scratch_operands = 0 : i64, tpu.core_type = #tpu.core_type<tc>, window_params = [{transform_indices = @transform_0, window_bounds = array<i64: 1, 8, 32>}, {transform_indices = @transform_1, window_bounds = array<i64: 1, 4, 8>}, {transform_indices = @transform_2, window_bounds = array<i64: 1, 4, 1>}, {transform_indices = @transform_3, window_bounds = array<i64: 1, 1, 8>}, {transform_indices = @transform_4, window_bounds = array<i64: 1, 1, 8>}, {transform_indices = @transform_5, window_bounds = array<i64: 1, 4, 8>}]} {
    %c0 = arith.constant 0 : index
    %c0_0 = arith.constant 0 : index
    %c0_1 = arith.constant 0 : index
    %0 = vector.load %arg1[%c0, %c0_0, %c0_1] : memref<1x8x32xf32, #tpu.memory_space<vmem>>, vector<1x8x32xf32>
    %cst = arith.constant dense<0xFF800000> : vector<1x8xf32>
    %1 = vector.multi_reduction <maximumf>, %0, %cst [2] : vector<1x8x32xf32> to vector<1x8xf32>
    %2 = vector.shape_cast %1 : vector<1x8xf32> to vector<1x8x1xf32>
    %3 = vector.broadcast %2 : vector<1x8x1xf32> to vector<1x8x32xf32>
    %4 = arith.subf %0, %3 : vector<1x8x32xf32>
    %5 = math.exp %4 : vector<1x8x32xf32>
    %cst_2 = arith.constant dense<0.000000e+00> : vector<1x8xf32>
    %6 = vector.multi_reduction <add>, %5, %cst_2 [2] : vector<1x8x32xf32> to vector<1x8xf32>
    %7 = tpu.reciprocal %6 {approx = true} : vector<1x8xf32> -> vector<1x8xf32>
    %8 = vector.shape_cast %7 : vector<1x8xf32> to vector<1x1x8xf32>
    %c0_3 = arith.constant 0 : index
    %c0_4 = arith.constant 0 : index
    %c0_5 = arith.constant 0 : index
    %9 = vector.load %arg4[%c0_3, %c0_4, %c0_5] : memref<1x1x8xf32, #tpu.memory_space<vmem>>, vector<1x1x8xf32>
    tpu.vector_store %arg4[%c0_3, %c0_4, %c0_5], %8 {strides = array<i32>} : memref<1x1x8xf32, #tpu.memory_space<vmem>>, vector<1x1x8xf32>,
    %10 = tpu.iota {dimensions = array<i32: 2>} : vector<1x8x32xi32>
    %11 = vector.broadcast %2 : vector<1x8x1xf32> to vector<1x8x32xf32>
    %12 = arith.cmpf oeq, %0, %11 : vector<1x8x32xf32>
    %c32_i32 = arith.constant 32 : i32
    %13 = vector.broadcast %c32_i32 : i32 to vector<1x8x32xi32>
    %14 = arith.select %12, %10, %13 : vector<1x8x32xi1>, vector<1x8x32xi32>
    %cst_6 = arith.constant dense<2147483647> : vector<1x8xi32>
    %15 = vector.multi_reduction <minsi>, %14, %cst_6 [2] : vector<1x8x32xi32> to vector<1x8xi32>
    %16 = vector.shape_cast %15 : vector<1x8xi32> to vector<1x1x8xi32>
    %c0_7 = arith.constant 0 : index
    %c0_8 = arith.constant 0 : index
    %c0_9 = arith.constant 0 : index
    %17 = vector.load %arg5[%c0_7, %c0_8, %c0_9] : memref<1x1x8xi32, #tpu.memory_space<vmem>>, vector<1x1x8xi32>
    tpu.vector_store %arg5[%c0_7, %c0_8, %c0_9], %16 {strides = array<i32>} : memref<1x1x8xi32, #tpu.memory_space<vmem>>, vector<1x1x8xi32>,
    %c0_10 = arith.constant 0 : index
    %c0_11 = arith.constant 0 : index
    %c0_12 = arith.constant 0 : index
    %18 = vector.load %arg2[%c0_10, %c0_11, %c0_12] : memref<1x4x8xf32, #tpu.memory_space<vmem>>, vector<1x4x8xf32>
    %19 = vector.extract_strided_slice %18 {offsets = [0, 0, 0], sizes = [1, 2, 8], strides = [1, 1, 1]} : vector<1x4x8xf32> to vector<1x2x8xf32>
    %20 = vector.extract_strided_slice %18 {offsets = [0, 2, 0], sizes = [1, 2, 8], strides = [1, 1, 1]} : vector<1x4x8xf32> to vector<1x2x8xf32>
    %cst_13 = arith.constant 5.000000e-01 : f32
    %21 = vector.broadcast %cst_13 : f32 to vector<1x2x8xf32>
    %22 = arith.mulf %21, %20 : vector<1x2x8xf32>
    %c0_14 = arith.constant 0 : index
    %c0_15 = arith.constant 0 : index
    %c0_16 = arith.constant 0 : index
    %23 = vector.load %arg3[%c0_14, %c0_15, %c0_16] : memref<1x4x1xf32, #tpu.memory_space<vmem>>, vector<1x4x1xf32>
    %24 = arith.subf %19, %22 : vector<1x2x8xf32>
    %cst_17 = arith.constant 0.000000e+00 : f32
    %cst_18 = arith.constant 1.000000e+00 : f32
    %25 = vector.broadcast %cst_17 : f32 to vector<1x2x8xf32>
    %26 = arith.maximumf %25, %24 : vector<1x2x8xf32>
    %27 = vector.broadcast %cst_18 : f32 to vector<1x2x8xf32>
    %28 = arith.minimumf %27, %26 : vector<1x2x8xf32>
    %29 = vector.extract_strided_slice %23 {offsets = [0, 0, 0], sizes = [1, 2, 1], strides = [1, 1, 1]} : vector<1x4x1xf32> to vector<1x2x1xf32>
    %30 = vector.broadcast %29 : vector<1x2x1xf32> to vector<1x2x8xf32>
    %31 = arith.mulf %28, %30 : vector<1x2x8xf32>
    %c0_19 = arith.constant 0 : index
    %c0_20 = arith.constant 0 : index
    %c0_21 = arith.constant 0 : index
    %32 = vector.load %arg6[%c0_19, %c0_20, %c0_21] : memref<1x4x8xf32, #tpu.memory_space<vmem>>, vector<1x2x8xf32>
    tpu.vector_store %arg6[%c0_19, %c0_20, %c0_21], %31 {strides = array<i32>} : memref<1x4x8xf32, #tpu.memory_space<vmem>>, vector<1x2x8xf32>,
    %33 = arith.addf %19, %22 : vector<1x2x8xf32>
    %cst_22 = arith.constant 0.000000e+00 : f32
    %cst_23 = arith.constant 1.000000e+00 : f32
    %34 = vector.broadcast %cst_22 : f32 to vector<1x2x8xf32>
    %35 = arith.maximumf %34, %33 : vector<1x2x8xf32>
    %36 = vector.broadcast %cst_23 : f32 to vector<1x2x8xf32>
    %37 = arith.minimumf %36, %35 : vector<1x2x8xf32>
    %38 = vector.extract_strided_slice %23 {offsets = [0, 2, 0], sizes = [1, 2, 1], strides = [1, 1, 1]} : vector<1x4x1xf32> to vector<1x2x1xf32>
    %39 = vector.broadcast %38 : vector<1x2x1xf32> to vector<1x2x8xf32>
    %40 = arith.mulf %37, %39 : vector<1x2x8xf32>
    %c0_24 = arith.constant 0 : index
    %c2 = arith.constant 2 : index
    %c0_25 = arith.constant 0 : index
    %41 = vector.load %arg6[%c0_24, %c2, %c0_25] : memref<1x4x8xf32, #tpu.memory_space<vmem>>, vector<1x2x8xf32>
    tpu.vector_store %arg6[%c0_24, %c2, %c0_25], %40 {strides = array<i32>} : memref<1x4x8xf32, #tpu.memory_space<vmem>>, vector<1x2x8xf32>,
    return
  }
  func.func @transform_0(%arg0: i32) -> (i32, i32, i32) {
    %c0_i32 = arith.constant 0 : i32
    %c0_i32_0 = arith.constant 0 : i32
    %c0_i32_1 = arith.constant 0 : i32
    return %arg0, %c0_i32, %c0_i32_0 : i32, i32, i32
  }
  func.func @transform_1(%arg0: i32) -> (i32, i32, i32) {
    %c0_i32 = arith.constant 0 : i32
    %c0_i32_0 = arith.constant 0 : i32
    %c0_i32_1 = arith.constant 0 : i32
    return %arg0, %c0_i32, %c0_i32_0 : i32, i32, i32
  }
  func.func @transform_2(%arg0: i32) -> (i32, i32, i32) {
    %c0_i32 = arith.constant 0 : i32
    %c0_i32_0 = arith.constant 0 : i32
    %c0_i32_1 = arith.constant 0 : i32
    return %arg0, %c0_i32, %c0_i32_0 : i32, i32, i32
  }
  func.func @transform_3(%arg0: i32) -> (i32, i32, i32) {
    %c0_i32 = arith.constant 0 : i32
    %c0_i32_0 = arith.constant 0 : i32
    %c0_i32_1 = arith.constant 0 : i32
    return %arg0, %c0_i32, %c0_i32_0 : i32, i32, i32
  }
  func.func @transform_4(%arg0: i32) -> (i32, i32, i32) {
    %c0_i32 = arith.constant 0 : i32
    %c0_i32_0 = arith.constant 0 : i32
    %c0_i32_1 = arith.constant 0 : i32
    return %arg0, %c0_i32, %c0_i32_0 : i32, i32, i32
  }
  func.func @transform_5(%arg0: i32) -> (i32, i32, i32) {
    %c0_i32 = arith.constant 0 : i32
    %c0_i32_0 = arith.constant 0 : i32
    %c0_i32_1 = arith.constant 0 : i32
    return %arg0, %c0_i32, %c0_i32_0 : i32, i32, i32
  }
}

</mosaic_0001>

<llo_original>
// kernel: postprocess.1
$region0: #{postprocess.1}
  #allocation0 [shape = 'u32[]', space=smem, size = 0x4, offset = 0x4, fixed_abs, tag = 'smem constant byte address 0x4 - core index']
  #allocation1 [shape = 'u32[72,128]{1,0:T(1,128)}', space=vmem, size = 0x9000, scoped, tag = 'internal scratch']
  %s0 = inlined_call_operand.vmem [shape: f32[2,8,32], index: 0, kind: input, shape index: {}]
  %s1 = inlined_call_operand.vmem [shape: f32[2,4,8], index: 1, kind: input, shape index: {}]
  %s2 = inlined_call_operand.vmem [shape: f32[2,4,1], index: 2, kind: input, shape index: {}]
  %s3 = inlined_call_operand.hbm [shape: f32[2,1,8], index: 3, kind: output, shape index: {0}]
  %s4 = inlined_call_operand.hbm [shape: s32[2,1,8], index: 4, kind: output, shape index: {1}]
  %s5 = inlined_call_operand.hbm [shape: f32[2,4,8], index: 5, kind: output, shape index: {2}]
  %6 = xla_tuple %s3, %s4, %s5
  %s7 = sld [smem:[#allocation0]]
  $region61: #{postprocess.1} parent=0
    _
  %s9 = ssub.s32 1, %s7
  %s10 = scalar_select 0, %s9, %s7
  $region1: #{postprocess.1} parent=0
    #allocation2 [shape = 'u8[1024]{0}', space=vmem, size = 0x400, scoped, tag = 'output window, operand 0']
    #allocation3 [shape = 's32[2]{0}', space=sflag, size = 0x8, scoped, tag = 'scoped memory for postprocess.1']
    #allocation4 [shape = 'u8[1024]{0}', space=vmem, size = 0x400, scoped, tag = 'output window, operand 1']
    #allocation5 [shape = 's32[2]{0}', space=sflag, size = 0x8, scoped, tag = 'scoped memory for postprocess.1']
    #allocation6 [shape = 'u8[4096]{0}', space=vmem, size = 0x1000, scoped, tag = 'output window, operand 2']
    %11 = vsyncpa [#allocation3], 0
    %s12 = scalar_lea.sflag [#allocation3], 1
    %13 = vsyncpa %s12, 0
    %14 = vsyncpa [#allocation5], 0
    %s15 = scalar_lea.sflag [#allocation5], 1
    %16 = vsyncpa %s15, 0
    loop: start=0, step=1, limit=4
    $region2: #{postprocess.1} parent=1 // loop_pre_header
      _
    $region3: #{postprocess.1} parent=1 // loop_header
      %s18 = sphi 0, %s22
      %p19 = scmp.ge.s32.totalorder %s18, 4
      %s28 = sphi 0, %s30
      %s31 = sphi 0, %s28
      %s32 = sphi 0, %s31
      %s48 = sphi 0, %s32
      %s54 = sphi 0, %s56
      %s57 = sphi 0, %s54
      %s58 = sphi 0, %s57
      %s74 = sphi 0, %s58
      %s80 = sphi 0, %s82
      %s83 = sphi 0, %s80
      %s84 = sphi 0, %s83
      %s100 = sphi 0, %s84
      %s106 = sphi 0, %s108
      %s109 = sphi 0, %s106
      %s110 = sphi 0, %s109
      %s126 = sphi 0, %s110
      %s132 = sphi 0, %s134
      %s135 = sphi 0, %s132
      %s136 = sphi 0, %s135
      %s152 = sphi 0, %s136
      %s158 = sphi 0, %s160
      %s161 = sphi 0, %s158
      %s162 = sphi 0, %s161
      %s178 = sphi 0, %s162
    $region4: #{postprocess.1} parent=1 // loop_header_branch
      %21 = sbr.rel (%p19) target = $region8
    $region5: #{postprocess.1} parent=1 // loop_body
      %s23 = ssub.s32 %s18, 1
      %s24 = ssub.s32 %s18, 2
      %s25 = sadd.s32 %s18, 1
      %s26 = ssub.s32 %s18, %s25
      %p27 = scmp.eq.s32.totalorder %s26, 0
      %s29 = sadd.s32 %s28, 1
      %s30 = scalar_select %p27, %s28, %s29
      %p33 = pneg %p27
      %p34 = scmp.eq.s32.totalorder %s18, 1
      %p35 = por %p33, %p34
      %p36 = scmp.ne.s32.totalorder %s28, %s31
      %p37 = scmp.eq.s32.totalorder %s18, 0
      %p38 = por %p36, %p37
      %p39 = scmp.ne.s32.totalorder %s28, %s31
      %p40 = scmp.eq.s32.totalorder %s23, 1
      %p41 = por %p39, %p40
      %p42 = scmp.ne.s32.totalorder %s31, %s32
      %p43 = scmp.eq.s32.totalorder %s23, 0
      %p44 = por %p42, %p43
      %p45 = scmp.ne.s32.totalorder %s31, %s32
      %p46 = scmp.eq.s32.totalorder %s24, 1
      %p47 = por %p45, %p46
      %p49 = scmp.ne.s32.totalorder %s32, %s48
      %p50 = scmp.eq.s32.totalorder %s24, 0
      %p51 = por %p49, %p50
      %s52 = ssub.s32 %s18, %s25
      %p53 = scmp.eq.s32.totalorder %s52, 0
      %s55 = sadd.s32 %s54, 1
      %s56 = scalar_select %p53, %s54, %s55
      %p59 = pneg %p53
      %p60 = scmp.eq.s32.totalorder %s18, 1
      %p61 = por %p59, %p60
      %p62 = scmp.ne.s32.totalorder %s54, %s57
      %p63 = scmp.eq.s32.totalorder %s18, 0
      %p64 = por %p62, %p63
      %p65 = scmp.ne.s32.totalorder %s54, %s57
      %p66 = scmp.eq.s32.totalorder %s23, 1
      %p67 = por %p65, %p66
      %p68 = scmp.ne.s32.totalorder %s57, %s58
      %p69 = scmp.eq.s32.totalorder %s23, 0
      %p70 = por %p68, %p69
      %p71 = scmp.ne.s32.totalorder %s57, %s58
      %p72 = scmp.eq.s32.totalorder %s24, 1
      %p73 = por %p71, %p72
      %p75 = scmp.ne.s32.totalorder %s58, %s74
      %p76 = scmp.eq.s32.totalorder %s24, 0
      %p77 = por %p75, %p76
      %s78 = ssub.s32 %s18, %s25
      %p79 = scmp.eq.s32.totalorder %s78, 0
      %s81 = sadd.s32 %s80, 1
      %s82 = scalar_select %p79, %s80, %s81
      %p85 = pneg %p79
      %p86 = scmp.eq.s32.totalorder %s18, 1
      %p87 = por %p85, %p86
      %p88 = scmp.ne.s32.totalorder %s80, %s83
      %p89 = scmp.eq.s32.totalorder %s18, 0
      %p90 = por %p88, %p89
      %p91 = scmp.ne.s32.totalorder %s80, %s83
      %p92 = scmp.eq.s32.totalorder %s23, 1
      %p93 = por %p91, %p92
      %p94 = scmp.ne.s32.totalorder %s83, %s84
      %p95 = scmp.eq.s32.totalorder %s23, 0
      %p96 = por %p94, %p95
      %p97 = scmp.ne.s32.totalorder %s83, %s84
      %p98 = scmp.eq.s32.totalorder %s24, 1
      %p99 = por %p97, %p98
      %p101 = scmp.ne.s32.totalorder %s84, %s100
      %p102 = scmp.eq.s32.totalorder %s24, 0
      %p103 = por %p101, %p102
      %s104 = ssub.s32 %s18, %s25
      %p105 = scmp.eq.s32.totalorder %s104, 0
      %s107 = sadd.s32 %s106, 1
      %s108 = scalar_select %p105, %s106, %s107
      %p111 = pneg %p105
      %p112 = scmp.eq.s32.totalorder %s18, 1
      %p113 = por %p111, %p112
      %p114 = scmp.ne.s32.totalorder %s106, %s109
      %p115 = scmp.eq.s32.totalorder %s18, 0
      %p116 = por %p114, %p115
      %p117 = scmp.ne.s32.totalorder %s106, %s109
      %p118 = scmp.eq.s32.totalorder %s23, 1
      %p119 = por %p117, %p118
      %p120 = scmp.ne.s32.totalorder %s109, %s110
      %p121 = scmp.eq.s32.totalorder %s23, 0
      %p122 = por %p120, %p121
      %p123 = scmp.ne.s32.totalorder %s109, %s110
      %p124 = scmp.eq.s32.totalorder %s24, 1
      %p125 = por %p123, %p124
      %p127 = scmp.ne.s32.totalorder %s110, %s126
      %p128 = scmp.eq.s32.totalorder %s24, 0
      %p129 = por %p127, %p128
      %s130 = ssub.s32 %s18, %s25
      %p131 = scmp.eq.s32.totalorder %s130, 0
      %s133 = sadd.s32 %s132, 1
      %s134 = scalar_select %p131, %s132, %s133
      %p137 = pneg %p131
      %p138 = scmp.eq.s32.totalorder %s18, 1
      %p139 = por %p137, %p138
      %p140 = scmp.ne.s32.totalorder %s132, %s135
      %p141 = scmp.eq.s32.totalorder %s18, 0
      %p142 = por %p140, %p141
      %p143 = scmp.ne.s32.totalorder %s132, %s135
      %p144 = scmp.eq.s32.totalorder %s23, 1
      %p145 = por %p143, %p144
      %p146 = scmp.ne.s32.totalorder %s135, %s136
      %p147 = scmp.eq.s32.totalorder %s23, 0
      %p148 = por %p146, %p147
      %p149 = scmp.ne.s32.totalorder %s135, %s136
      %p150 = scmp.eq.s32.totalorder %s24, 1
      %p151 = por %p149, %p150
      %p153 = scmp.ne.s32.totalorder %s136, %s152
      %p154 = scmp.eq.s32.totalorder %s24, 0
      %p155 = por %p153, %p154
      %s156 = ssub.s32 %s18, %s25
      %p157 = scmp.eq.s32.totalorder %s156, 0
      %s159 = sadd.s32 %s158, 1
      %s160 = scalar_select %p157, %s158, %s159
      %p163 = pneg %p157
      %p164 = scmp.eq.s32.totalorder %s18, 1
      %p165 = por %p163, %p164
      %p166 = scmp.ne.s32.totalorder %s158, %s161
      %p167 = scmp.eq.s32.totalorder %s18, 0
      %p168 = por %p166, %p167
      %p169 = scmp.ne.s32.totalorder %s158, %s161
      %p170 = scmp.eq.s32.totalorder %s23, 1
      %p171 = por %p169, %p170
      %p172 = scmp.ne.s32.totalorder %s161, %s162
      %p173 = scmp.eq.s32.totalorder %s23, 0
      %p174 = por %p172, %p173
      %p175 = scmp.ne.s32.totalorder %s161, %s162
      %p176 = scmp.eq.s32.totalorder %s24, 1
      %p177 = por %p175, %p176
      %p179 = scmp.ne.s32.totalorder %s162, %s178
      %p180 = scmp.eq.s32.totalorder %s24, 0
      %p181 = por %p179, %p180
      %p182 = scmp.le.s32.totalorder 1, %s18
      %p183 = scmp.lt.s32.totalorder %s18, 3
      %p184 = pnand %p182, %p183
      %p185 = pneg %p184
      // Predicated region
      $region9: #{postprocess.1} parent=5 // pred_check
        _
      $region10: #{postprocess.1} parent=5 // pred_check_branch
        %187 = sbr.rel (%p184) target = $region12
      $region11: #{postprocess.1} parent=5 // pred_region
        %s188 = ssub.s32 %s18, 1
      $region12: #{postprocess.1} parent=5 // pred_fallthru
        _
      %p189 = scmp.lt.s32.totalorder %s18, 2
      // Predicated region
      $region13: #{postprocess.1} parent=5 // pred_check
        %p190 = pneg %p189
      $region14: #{postprocess.1} parent=5 // pred_check_branch
        %192 = sbr.rel (%p190) target = $region16
      $region15: #{postprocess.1} parent=5 // pred_region
        // Predicated region
        $region17: #{postprocess.1} parent=15 // pred_check
          %p193 = pneg %p38
        $region18: #{postprocess.1} parent=15 // pred_check_branch
          %195 = sbr.rel (%p193) target = $region20
        $region19: #{postprocess.1} parent=15 // pred_region
          %p196 = scmp.lt.s32.totalorder %s18, 1
          %s197 = scalar_select %p196, %s18, 1
          %s198 = smul.addr %s197, 8
          %s199 = scalar_lea.vmem %s0, %s198
        $region20: #{postprocess.1} parent=15 // pred_fallthru
          _
        // Predicated region
        $region21: #{postprocess.1} parent=15 // pred_check
          %p200 = pneg %p64
        $region22: #{postprocess.1} parent=15 // pred_check_branch
          %202 = sbr.rel (%p200) target = $region24
        $region23: #{postprocess.1} parent=15 // pred_region
          %p203 = scmp.lt.s32.totalorder %s18, 1
          %s204 = scalar_select %p203, %s18, 1
          %s205 = smul.addr %s204, 4
          %s206 = scalar_lea.vmem %s1, %s205
        $region24: #{postprocess.1} parent=15 // pred_fallthru
          _
        // Predicated region
        $region25: #{postprocess.1} parent=15 // pred_check
          %p207 = pneg %p90
        $region26: #{postprocess.1} parent=15 // pred_check_branch
          %209 = sbr.rel (%p207) target = $region28
        $region27: #{postprocess.1} parent=15 // pred_region
          %p210 = scmp.lt.s32.totalorder %s18, 1
          %s211 = scalar_select %p210, %s18, 1
          %s212 = smul.addr %s211, 4
          %s213 = scalar_lea.vmem %s2, %s212
        $region28: #{postprocess.1} parent=15 // pred_fallthru
          _
      $region16: #{postprocess.1} parent=5 // pred_fallthru
        _
      %p214 = scmp.le.s32.totalorder 1, %s18
      %p215 = scmp.lt.s32.totalorder %s18, 3
      %p216 = pnand %p214, %p215
      %p217 = pneg %p216
      // Predicated region
      $region29: #{postprocess.1} parent=5 // pred_check
        _
      $region30: #{postprocess.1} parent=5 // pred_check_branch
        %219 = sbr.rel (%p216) target = $region32
      $region31: #{postprocess.1} parent=5 // pred_region
        %s220 = ssub.s32 %s18, 1
        %p221 = scmp.lt.s32.totalorder %s23, 1
        %s222 = scalar_select %p221, %s23, 1
        %s223 = smul.addr %s222, 8
        %s224 = scalar_lea.vmem %s0, %s223
        %p225 = pneg %p44
        %p226 = pneg %p41
        %p227 = scmp.lt.s32.totalorder %s23, 1
        %s228 = scalar_select %p227, %s23, 1
        %s229 = smul.addr %s228, 4
        %s230 = scalar_lea.vmem %s1, %s229
        %p231 = pneg %p70
        %p232 = pneg %p67
        %p233 = scmp.lt.s32.totalorder %s23, 1
        %s234 = scalar_select %p233, %s23, 1
        %s235 = smul.addr %s234, 4
        %s236 = scalar_lea.vmem %s2, %s235
        %p237 = pneg %p96
        %p238 = pneg %p93
        %p239 = pneg %p122
        %p240 = pneg %p119
        %s241 = sand.u32 %s109, 1
        %s242 = scalar_lea.sflag [#allocation3], %s241
        %s243 = sand.u32 %s109, 1
        %s244 = scalar_lea.vmem [#allocation2], %s243
        %p245 = pneg %p148
        %p246 = pneg %p145
        %s247 = sand.u32 %s23, 1
        %s248 = scalar_lea.sflag [#allocation5], %s247
        %s249 = sand.u32 %s135, 1
        %s250 = scalar_lea.vmem [#allocation4], %s249
        %p251 = pneg %p174
        %p252 = pneg %p171
        %s253 = sand.u32 %s23, 1
        %s254 = scalar_lea.sflag [#allocation5], %s253
        %s255 = sand.u32 %s161, 1
        %s256 = smul.addr %s255, 4
        %s257 = scalar_lea.vmem [#allocation6], %s256
        %p258 = scmp.lt.s32.totalorder %s23, 1
        %s259 = scalar_select %p258, %s23, 1
        %s260 = smul.addr %s259, 8
        %s261 = scalar_lea.vmem %s0, %s260
        %p262 = scmp.lt.s32.totalorder %s23, 1
        %s263 = scalar_select %p262, %s23, 1
        %s264 = smul.addr %s263, 4
        %s265 = scalar_lea.vmem %s1, %s264
        %p266 = scmp.lt.s32.totalorder %s23, 1
        %s267 = scalar_select %p266, %s23, 1
        %s268 = smul.addr %s267, 4
        %s269 = scalar_lea.vmem %s2, %s268
        %v270 = vld [vmem:[%s261] sm:$0xff]
        %vm271 = vcmask 261120
        %v272 = vsel %vm271, %v270, -inf
        %273 = vmax.xlane.f32.xlu0 %v272
        %v274 = vpop.xlane.xlu0 %273
        %v275 = vsub.f32 %v270, %v274
        %v276 = vmul.f32 %v275, 1.442695
        %v277 = vpow.pop %v276
        %v278 = vsel %vm271, %v277, 0.0
        %279 = vadd.xlane.f32.xlu0 %v278
        %v280 = vpop.xlane.xlu0 %279
        %v281 = vrcp.pop %v280
        %v283 = vlaneseq
        %v284 = vand.u32 %v283, 127
        %v285 = vperm.slane %v281, %v284
        %vm287 = vcmask 57344
        %288 = vst.msk [vmem:[%s244] sm:$0x1] %vm287, %v285
        %vm289 = vcmp.eq.f32.partialorder %v270, %v274
        %v290 = vsel %vm289, %v284, 32
        %v291 = vsel %vm271, %v290, 2147483647
        %v292 = vand.u32 %v291, 65535
        %v293 = vshra.s32 %v291, 16
        %v294 = vcvt.s32.f32 %v292
        %v295 = vcvt.s32.f32 %v293
        %296 = vmin.xlane.f32.xlu0 %v295
        %v297 = vpop.xlane.xlu0 %296
        %vm298 = vcmp.eq.f32.partialorder %v295, %v297
        %v299 = vsel %vm298, %v294, inf
        %300 = vmin.xlane.f32.xlu0 %v299
        %v301 = vpop.xlane.xlu0 %300
        %v302 = vcvt.f32.s32 %v301
        %v303 = vcvt.f32.s32 %v297
        %v304 = vshll.u32 %v303, 16
        %v305 = vadd.s32 %v304, %v302
        %v306 = vperm.slane %v305, %v284
        %307 = vst.msk [vmem:[%s250] sm:$0x1] %vm287, %v306
        %v308 = vld [vmem:[%s265] sm:$0xf]
        %v309 = vmul.f32 %v308, 0.5
        %v310 = vld [vmem:[%s269] sm:$0xf]
        %v312 = vrot.slane %v309, 2
        %v314 = vsub.f32 %v308, %v312
        %v315 = vmax.f32 %v314, 0.0
        %v316 = vmin.f32 %v315, 1.0
        %318 = vset.pattern.permute.xlu0 0
        %319 = vperm.xlu0 %318, %v310
        %v320 = vpop.permute.xlu0 %319
        %v322 = vmul.f32 %v316, %v320
        %vm323 = vcmask 58368
        %324 = vst.msk [vmem:[%s257] sm:$0x3] %vm323, %v322
        %v325 = vadd.f32 %v308, %v312
        %v326 = vmax.f32 %v325, 0.0
        %v327 = vmin.f32 %v326, 1.0
        %v328 = vrot.slane %v320, 2
        %v330 = vmul.f32 %v327, %v328
        %331 = vst.msk [vmem:[%s257 + $0x2] sm:$0x3] %vm323, %v330
        %s332 = sand.u32 %s109, 1
        %s333 = scalar_lea.sflag [#allocation3], %s332
        %s334 = sand.u32 %s109, 1
        %s335 = scalar_lea.vmem [#allocation2], %s334
        %s336 = sand.u32 %s23, 1
        %s337 = scalar_lea.sflag [#allocation5], %s336
        %s338 = sand.u32 %s135, 1
        %s339 = scalar_lea.vmem [#allocation4], %s338
        %s340 = sand.u32 %s23, 1
        %s341 = scalar_lea.sflag [#allocation5], %s340
        %s342 = sand.u32 %s161, 1
        %s343 = smul.addr %s342, 4
        %s344 = scalar_lea.vmem [#allocation6], %s343
        // Predicated region
        $region33: #{postprocess.1} parent=31 // pred_check
          %p345 = pneg %p119
        $region34: #{postprocess.1} parent=31 // pred_check_branch
          %347 = sbr.rel (%p345) target = $region36
        $region35: #{postprocess.1} parent=31 // pred_region
          %349 = vsyncadd %s333, 0
          %s350 = scalar_lea.hbm %s3, %s23
          %s352 = sshll.u32 %s335, 4
          %s353 = int_to_ptr.vmem [resolvable:$true] %s352
          %s354 = sshll.u32 %s350, 4
          %s355 = int_to_ptr.hbm [resolvable:$true] %s354
          %357 = dma.vmem_to_hbm [thread:$0]  %s353, 16, %s355, %s333
        $region36: #{postprocess.1} parent=31 // pred_fallthru
          _
        // Predicated region
        $region37: #{postprocess.1} parent=31 // pred_check
          %p358 = pneg %p145
        $region38: #{postprocess.1} parent=31 // pred_check_branch
          %360 = sbr.rel (%p358) target = $region40
        $region39: #{postprocess.1} parent=31 // pred_region
          %362 = vsyncadd %s337, 0
          %s363 = scalar_lea.hbm %s4, %s23
          %s365 = sshll.u32 %s339, 4
          %s366 = int_to_ptr.vmem [resolvable:$true] %s365
          %s367 = sshll.u32 %s363, 4
          %s368 = int_to_ptr.hbm [resolvable:$true] %s367
          %370 = dma.vmem_to_hbm [thread:$0]  %s366, 16, %s368, %s337
        $region40: #{postprocess.1} parent=31 // pred_fallthru
          _
        // Predicated region
        $region41: #{postprocess.1} parent=31 // pred_check
          %p371 = pneg %p171
        $region42: #{postprocess.1} parent=31 // pred_check_branch
          %373 = sbr.rel (%p371) target = $region44
        $region43: #{postprocess.1} parent=31 // pred_region
          %375 = vsyncadd %s341, 0
          %s376 = smul.addr %s23, 4
          %s377 = scalar_lea.hbm %s5, %s376
          %s379 = sshll.u32 %s344, 4
          %s380 = int_to_ptr.vmem [resolvable:$true] %s379
          %s381 = sshll.u32 %s377, 4
          %s382 = int_to_ptr.hbm [resolvable:$true] %s381
          %384 = dma.vmem_to_hbm [thread:$0]  %s380, 64, %s382, %s341
        $region44: #{postprocess.1} parent=31 // pred_fallthru
          _
      $region32: #{postprocess.1} parent=5 // pred_fallthru
        _
      %p385 = scmp.le.s32.totalorder 2, %s18
      // Predicated region
      $region45: #{postprocess.1} parent=5 // pred_check
        %p386 = pneg %p385
      $region46: #{postprocess.1} parent=5 // pred_check_branch
        %388 = sbr.rel (%p386) target = $region48
      $region47: #{postprocess.1} parent=5 // pred_region
        %s389 = ssub.s32 %s18, 2
        // Predicated region
        $region49: #{postprocess.1} parent=47 // pred_check
          %p390 = pneg %p125
        $region50: #{postprocess.1} parent=47 // pred_check_branch
          %392 = sbr.rel (%p390) target = $region52
        $region51: #{postprocess.1} parent=47 // pred_region
          %s393 = sand.u32 %s110, 1
          %s394 = scalar_lea.sflag [#allocation3], %s393
          %s395 = sand.u32 %s110, 1
          %s396 = scalar_lea.vmem [#allocation2], %s395
          %398 = dma.done %s394, 16
        $region52: #{postprocess.1} parent=47 // pred_fallthru
          _
        // Predicated region
        $region53: #{postprocess.1} parent=47 // pred_check
          %p399 = pneg %p151
        $region54: #{postprocess.1} parent=47 // pred_check_branch
          %401 = sbr.rel (%p399) target = $region56
        $region55: #{postprocess.1} parent=47 // pred_region
          %s402 = sand.u32 %s24, 1
          %s403 = scalar_lea.sflag [#allocation5], %s402
          %s404 = sand.u32 %s136, 1
          %s405 = scalar_lea.vmem [#allocation4], %s404
          %407 = dma.done %s403, 16
        $region56: #{postprocess.1} parent=47 // pred_fallthru
          _
        // Predicated region
        $region57: #{postprocess.1} parent=47 // pred_check
          %p408 = pneg %p177
        $region58: #{postprocess.1} parent=47 // pred_check_branch
          %410 = sbr.rel (%p408) target = $region60
        $region59: #{postprocess.1} parent=47 // pred_region
          %s411 = sand.u32 %s24, 1
          %s412 = scalar_lea.sflag [#allocation5], %s411
          %s413 = sand.u32 %s162, 1
          %s414 = smul.addr %s413, 4
          %s415 = scalar_lea.vmem [#allocation6], %s414
          %417 = dma.done %s412, 64
        $region60: #{postprocess.1} parent=47 // pred_fallthru
          _
      $region48: #{postprocess.1} parent=5 // pred_fallthru
        _
    $region6: #{postprocess.1} parent=1 // loop_footer
      %s22 = sadd.s32 1, %s18
    $region7: #{postprocess.1} parent=1 // loop_footer_branch
      %17 = sbr.rel target = $region3
    $region8: #{postprocess.1} parent=1 // loop_exit
      _
    %418 = vsyncpa [#allocation3], 1
    %s419 = scalar_lea.sflag [#allocation3], 1
    %420 = vsyncpa %s419, 1
    %421 = vsyncpa [#allocation5], 1
    %s422 = scalar_lea.sflag [#allocation5], 1
    %423 = vsyncpa %s422, 1

</llo_original>
